<compile_context>
chip_gen: v6e
topology: v6e:2x2x1
jax: 0.10.0
libtpu: 0.0.40
codegen_flags: <defaults>
</compile_context>

<pallas_src>
import functools

import jax
import jax.numpy as jnp
from jax.experimental import pallas as pl
from jax.experimental.pallas import tpu as pltpu


def _round_up(a, m):
    return ((a + m - 1) // m) * m


def _gelu(x, approximate=False):
    if approximate:
        # tanh GELU -> EUP slot (effectively free under MXU work); opt-in only.
        return jax.nn.gelu(x, approximate=True)
    # PyTorch nn.GELU() default is the exact erf-based GELU (kept for parity).
    return 0.5 * x * (1.0 + jax.lax.erf(x * 0.7071067811865476))


# ---------------------------------------------------------------------------
# Kernel 1: 3-layer MLP (Linear+GELU, Linear+GELU, Linear) + L2 normalize.
# bf16 operands feed the MXU, accumulation and pointwise math stay in f32.
# ---------------------------------------------------------------------------
def _mlp_norm_kernel(x_ref, w1_ref, b1_ref, w2_ref, b2_ref, w3_ref, b3_ref,
                     z_ref, *, approx_gelu):
    # Layer 1: Linear + GELU
    h = jnp.dot(x_ref[...], w1_ref[...], preferred_element_type=jnp.float32)
    h = _gelu(h + b1_ref[...], approx_gelu)

    # Layer 2: Linear + GELU
    h = jnp.dot(h.astype(jnp.bfloat16), w2_ref[...],
                preferred_element_type=jnp.float32)
    h = _gelu(h + b2_ref[...], approx_gelu)

    # Layer 3: Linear -> bottleneck
    z = jnp.dot(h.astype(jnp.bfloat16), w3_ref[...],
                preferred_element_type=jnp.float32) + b3_ref[...]

    # F.normalize(dim=-1, p=2):  z / max(||z||, 1e-12)
    #   == z * rsqrt(max(||z||^2, 1e-24))   (EUP rsqrt, no full-width divide)
    ssq = jnp.sum(z * z, axis=-1, keepdims=True)
    z = z * jax.lax.rsqrt(jnp.maximum(ssq, 1e-24))
    z_ref[...] = z.astype(z_ref.dtype)


# ---------------------------------------------------------------------------
# Kernel 2: weight-normalized last layer  y = z @ Wn, tiled over (out_dim, B).
# out_dim is the OUTER grid axis so each Wn tile streams from HBM once.
# ---------------------------------------------------------------------------
def _last_layer_kernel(z_ref, wl_ref, o_ref):
    o_ref[...] = jnp.dot(z_ref[...], wl_ref[...],
                         preferred_element_type=jnp.float32).astype(o_ref.dtype)


def dino_head_forward(x, params, *, tile_b=256, tile_n=8192,
                      out_dtype=jnp.bfloat16, approx_gelu=False):
    """x: (B, in_dim). params: dict of pre-transposed bf16 weights (init_params).

    tile_b: batch tile (256 good for v6e/v7x; 128 already saturates v5e's MXU).
    tile_n: out_dim tile for the last-layer matmul; out_dim is zero-padded to a
            128-aligned multiple of tile_n and the result is sliced back.
    out_dtype: bf16 by default (phase 2 is HBM-writeback bound); pass
            jnp.float32 for a full-precision output at ~2x writeback cost.
    """
    B, in_dim = x.shape

    # Parameters are stored pre-cast (see init_params); these astypes are
    # no-ops on the hot path and only guard against f32 params being passed.
    w1 = params["w1"].astype(jnp.bfloat16)
    b1 = params["b1"].astype(jnp.float32)
    w2 = params["w2"].astype(jnp.bfloat16)
    b2 = params["b2"].astype(jnp.float32)
    w3 = params["w3"].astype(jnp.bfloat16)
    b3 = params["b3"].astype(jnp.float32)
    wl = params["wl"].astype(jnp.bfloat16)

    hid = w1.shape[1]
    bot = w3.shape[1]
    out_dim = wl.shape[1]

    # --- batch tiling: 16-row alignment (bf16 sublane packing), zero-pad B. ---
    tile_b = max(16, _round_up(min(tile_b, _round_up(B, 16)), 16))
    # Megacore (v7x has 2 TCs): if the whole batch fits one tile, split it so
    # the "parallel" batch axis has >= 2 iterations.
    if _round_up(B, tile_b) == tile_b and tile_b >= 32:
        tile_b = _round_up(tile_b // 2, 16)
    Bp = _round_up(B, tile_b)
    xb = x.astype(jnp.bfloat16)
    if Bp != B:
        xb = jnp.pad(xb, ((0, Bp - B), (0, 0)))

    # --- out_dim tiling: pad to a 128-aligned multiple of tile_n (never fall
    #     back to one giant tile that could blow the v7x 64 MiB VMEM). ---
    tile_n = _round_up(min(tile_n, _round_up(out_dim, 128)), 128)
    Np = _round_up(out_dim, tile_n)
    if Np != out_dim:
        wl = jnp.pad(wl, ((0, 0), (0, Np - out_dim)))

    grid_b = Bp // tile_b
    grid_n = Np // tile_n

    def nbytes(*arrs):
        return sum(int(a.size) * a.dtype.itemsize for a in arrs)

    # VMEM budgets. Weights are single-buffered (pl.Buffered(1)); x/z tiles are
    # double-buffered by the default pipeline. Clamp to 56 MiB: headroom under
    # v7x's 64 MiB physical VMEM for Mosaic internal scratch.
    VMEM_CEIL = 56 << 20
    vmem1 = int(nbytes(w1, b1, w2, b2, w3, b3)                 # resident, 1-deep
                + 2 * (tile_b * in_dim + tile_b * bot) * 2     # x/z tiles, 2-deep
                + 3 * tile_b * hid * 4) + (8 << 20)            # f32 intermediates
    vmem1 = max(32 << 20, min(vmem1, VMEM_CEIL))
    out_isz = jnp.dtype(out_dtype).itemsize
    vmem2 = int(2 * (bot * tile_n * 2 + tile_b * bot * 2
                     + tile_b * tile_n * out_isz)) + (8 << 20)
    vmem2 = max(32 << 20, min(vmem2, VMEM_CEIL))

    full = lambda i: (0, 0)  # constant index map for resident weights
    resident = dict(pipeline_mode=pl.Buffered(1))  # single-buffer constants

    # Phase 1: MLP + L2 normalize -> z (Bp, bot) in bf16.
    z = pl.pallas_call(
        functools.partial(_mlp_norm_kernel, approx_gelu=approx_gelu),
        out_shape=jax.ShapeDtypeStruct((Bp, bot), jnp.bfloat16),
        grid=(grid_b,),
        in_specs=[
            pl.BlockSpec((tile_b, in_dim), lambda i: (i, 0)),
            pl.BlockSpec((in_dim, hid), full, **resident),
            pl.BlockSpec((1, hid), full, **resident),
            pl.BlockSpec((hid, hid), full, **resident),
            pl.BlockSpec((1, hid), full, **resident),
            pl.BlockSpec((hid, bot), full, **resident),
            pl.BlockSpec((1, bot), full, **resident),
        ],
        out_specs=pl.BlockSpec((tile_b, bot), lambda i: (i, 0)),
        compiler_params=pltpu.CompilerParams(
            dimension_semantics=("parallel",),
            vmem_limit_bytes=vmem1),
    )(xb, w1, b1, w2, b2, w3, b3)

    # Phase 2: y = z @ Wn, grid (out_dim tiles OUTER, batch tiles inner).
    # TODO(synk): on v5e/v6e (128 MiB VMEM) the whole Wn could stay resident
    # and the two phases fused; not done here to keep a single v7x-safe path.
    y = pl.pallas_call(
        _last_layer_kernel,
        out_shape=jax.ShapeDtypeStruct((Bp, Np), out_dtype),
        grid=(grid_n, grid_b),
        in_specs=[
            pl.BlockSpec((tile_b, bot), lambda n, b: (b, 0)),
            pl.BlockSpec((bot, tile_n), lambda n, b: (0, n)),
        ],
        out_specs=pl.BlockSpec((tile_b, tile_n), lambda n, b: (b, n)),
        compiler_params=pltpu.CompilerParams(
            dimension_semantics=("parallel", "parallel"),
            vmem_limit_bytes=vmem2),
    )(z, wl)

    if Bp != B or Np != out_dim:
        y = y[:B, :out_dim]
    return y


def init_params(key, in_dim, hidden_dim, bottleneck_dim, out_dim):
    """Synthetic init mirroring DINOHead.__init__ shapes.

    Linear weights: trunc_normal(std=0.02), biases 0.
    last_layer: weight_norm(Linear(bottleneck, out, bias=False)), weight_g=1
    -> effective weight is V normalized per output row.
    Weights are pre-transposed to (in_features, out_features) and pre-cast to
    bf16 ONCE here (per the perf review), so the forward pass never re-casts.
    """
    ks = jax.random.split(key, 4)

    def trunc(k, shape, std=0.02):
        return std * jax.random.truncated_normal(k, -2.0, 2.0, shape, jnp.float32)

    w1 = trunc(ks[0], (in_dim, hidden_dim))
    b1 = jnp.zeros((1, hidden_dim), jnp.float32)
    w2 = trunc(ks[1], (hidden_dim, hidden_dim))
    b2 = jnp.zeros((1, hidden_dim), jnp.float32)
    w3 = trunc(ks[2], (hidden_dim, bottleneck_dim))
    b3 = jnp.zeros((1, bottleneck_dim), jnp.float32)

    v = jax.random.normal(ks[3], (out_dim, bottleneck_dim), jnp.float32)
    v_norm = jnp.sqrt(jnp.sum(v * v, axis=1, keepdims=True))
    wl = (v / v_norm).T  # g == 1; pre-transpose to (bottleneck, out_dim)

    return dict(w1=w1.astype(jnp.bfloat16), b1=b1,
                w2=w2.astype(jnp.bfloat16), b2=b2,
                w3=w3.astype(jnp.bfloat16), b3=b3,
                wl=wl.astype(jnp.bfloat16))


def _reference_f32(x, p):
    """f32 PyTorch-equivalent reference (weights upcast from stored bf16)."""
    f = jnp.float32
    h = _gelu(x @ p["w1"].astype(f) + p["b1"])
    h = _gelu(h @ p["w2"].astype(f) + p["b2"])
    z = h @ p["w3"].astype(f) + p["b3"]
    z = z / jnp.maximum(jnp.sqrt(jnp.sum(z * z, axis=-1, keepdims=True)), 1e-12)
    return z @ p["wl"].astype(f)


def _reference_bf16(x, p):
    """Reference with the same bf16-operand / f32-accumulate casts as the kernel."""
    bf = jnp.bfloat16
    h = jnp.dot(x.astype(bf), p["w1"], preferred_element_type=jnp.float32)
    h = _gelu(h + p["b1"])
    h = jnp.dot(h.astype(bf), p["w2"], preferred_element_type=jnp.float32)
    h = _gelu(h + p["b2"])
    z = jnp.dot(h.astype(bf), p["w3"], preferred_element_type=jnp.float32) + p["b3"]
    z = z * jax.lax.rsqrt(jnp.maximum(jnp.sum(z * z, -1, keepdims=True), 1e-24))
    return jnp.dot(z.astype(bf), p["wl"], preferred_element_type=jnp.float32)


if __name__ == "__main__":
    # Small, forward-consistent shapes; tiles chosen so both grids have >1 step.
    B, IN_DIM, HIDDEN, BOTTLENECK, OUT_DIM = 32, 32, 64, 32, 256

    key = jax.random.PRNGKey(0)
    k_x, k_p = jax.random.split(key)
    x = jax.random.normal(k_x, (B, IN_DIM), jnp.float32)
    params = init_params(k_p, IN_DIM, HIDDEN, BOTTLENECK, OUT_DIM)

    y = dino_head_forward(x, params, tile_b=16, tile_n=128)
    jax.block_until_ready(y)
    assert y.shape == (B, OUT_DIM)
    assert y.dtype == jnp.bfloat16

    y32 = y.astype(jnp.float32)

    # Kernel vs a reference applying identical bf16 operand casts (tight; the
    # extra slack covers the bf16 output quantization of the last layer).
    y_bf = _reference_bf16(x, params)
    assert jnp.allclose(y32, y_bf, atol=2e-2, rtol=2e-2), \
        float(jnp.max(jnp.abs(y32 - y_bf)))

    # Sanity check vs the f32 PyTorch-equivalent reference (loose; bf16
    # operand/output rounding accounts for the remaining difference).
    y_f32 = _reference_f32(x, params)
    assert float(jnp.max(jnp.abs(y32 - y_f32))) < 0.1

    print("KERNEL_OK")
</pallas_src>

<mosaic_0001>
module attributes {stable_mosaic.version = 11 : i64} {
  func.func @_mlp_norm_kernel(%arg0: i32, %arg1: memref<16x32xbf16, #tpu.memory_space<vmem>>, %arg2: memref<32x64xbf16, #tpu.memory_space<vmem>>, %arg3: memref<1x64xf32, #tpu.memory_space<vmem>>, %arg4: memref<64x64xbf16, #tpu.memory_space<vmem>>, %arg5: memref<1x64xf32, #tpu.memory_space<vmem>>, %arg6: memref<64x32xbf16, #tpu.memory_space<vmem>>, %arg7: memref<1x32xf32, #tpu.memory_space<vmem>>, %arg8: memref<16x32xbf16, #tpu.memory_space<vmem>>) attributes {dimension_semantics = [#tpu.dimension_semantics<parallel>], iteration_bounds = array<i64: 2>, scalar_prefetch = 0 : i64, scratch_operands = 0 : i64, tpu.core_type = #tpu.core_type<tc>, window_params = [{transform_indices = @transform_0, window_bounds = array<i64: 16, 32>}, {pipeline_mode = #tpu.pipeline_mode<synchronous>, transform_indices = @transform_1, window_bounds = array<i64: 32, 64>}, {pipeline_mode = #tpu.pipeline_mode<synchronous>, transform_indices = @transform_2, window_bounds = array<i64: 1, 64>}, {pipeline_mode = #tpu.pipeline_mode<synchronous>, transform_indices = @transform_3, window_bounds = array<i64: 64, 64>}, {pipeline_mode = #tpu.pipeline_mode<synchronous>, transform_indices = @transform_4, window_bounds = array<i64: 1, 64>}, {pipeline_mode = #tpu.pipeline_mode<synchronous>, transform_indices = @transform_5, window_bounds = array<i64: 64, 32>}, {pipeline_mode = #tpu.pipeline_mode<synchronous>, transform_indices = @transform_6, window_bounds = array<i64: 1, 32>}, {transform_indices = @transform_7, window_bounds = array<i64: 16, 32>}]} {
    %c0 = arith.constant 0 : index
    %c0_0 = arith.constant 0 : index
    %0 = vector.load %arg1[%c0, %c0_0] : memref<16x32xbf16, #tpu.memory_space<vmem>>, vector<16x32xbf16>
    %c0_1 = arith.constant 0 : index
    %c0_2 = arith.constant 0 : index
    %1 = vector.load %arg2[%c0_1, %c0_2] : memref<32x64xbf16, #tpu.memory_space<vmem>>, vector<32x64xbf16>
    %cst = arith.constant dense<0.000000e+00> : vector<16x64xf32>
    %2 = tpu.matmul %0, %1, %cst {dimension_numbers = #tpu.dot_dimension_numbers<[1], [0], [0], [1], [0, 0, 1, 1], [], []>} : vector<16x32xbf16>, vector<32x64xbf16>, vector<16x64xf32> -> vector<16x64xf32>
    %c0_3 = arith.constant 0 : index
    %c0_4 = arith.constant 0 : index
    %3 = vector.load %arg3[%c0_3, %c0_4] : memref<1x64xf32, #tpu.memory_space<vmem>>, vector<1x64xf32>
    %4 = vector.broadcast %3 : vector<1x64xf32> to vector<16x64xf32>
    %5 = arith.addf %2, %4 : vector<16x64xf32>
    %cst_5 = arith.constant 5.000000e-01 : f32
    %6 = vector.broadcast %cst_5 : f32 to vector<16x64xf32>
    %7 = arith.mulf %6, %5 : vector<16x64xf32>
    %cst_6 = arith.constant 0.707106769 : f32
    %8 = vector.broadcast %cst_6 : f32 to vector<16x64xf32>
    %9 = arith.mulf %5, %8 : vector<16x64xf32>
    %10 = math.erf %9 : vector<16x64xf32>
    %cst_7 = arith.constant 1.000000e+00 : f32
    %11 = vector.broadcast %cst_7 : f32 to vector<16x64xf32>
    %12 = arith.addf %11, %10 : vector<16x64xf32>
    %13 = arith.mulf %7, %12 : vector<16x64xf32>
    %14 = arith.truncf %13 : vector<16x64xf32> to vector<16x64xbf16>
    %c0_8 = arith.constant 0 : index
    %c0_9 = arith.constant 0 : index
    %15 = vector.load %arg4[%c0_8, %c0_9] : memref<64x64xbf16, #tpu.memory_space<vmem>>, vector<64x64xbf16>
    %cst_10 = arith.constant dense<0.000000e+00> : vector<16x64xf32>
    %16 = tpu.matmul %14, %15, %cst_10 {dimension_numbers = #tpu.dot_dimension_numbers<[1], [0], [0], [1], [0, 0, 1, 1], [], []>} : vector<16x64xbf16>, vector<64x64xbf16>, vector<16x64xf32> -> vector<16x64xf32>
    %c0_11 = arith.constant 0 : index
    %c0_12 = arith.constant 0 : index
    %17 = vector.load %arg5[%c0_11, %c0_12] : memref<1x64xf32, #tpu.memory_space<vmem>>, vector<1x64xf32>
    %18 = vector.broadcast %17 : vector<1x64xf32> to vector<16x64xf32>
    %19 = arith.addf %16, %18 : vector<16x64xf32>
    %cst_13 = arith.constant 5.000000e-01 : f32
    %20 = vector.broadcast %cst_13 : f32 to vector<16x64xf32>
    %21 = arith.mulf %20, %19 : vector<16x64xf32>
    %cst_14 = arith.constant 0.707106769 : f32
    %22 = vector.broadcast %cst_14 : f32 to vector<16x64xf32>
    %23 = arith.mulf %19, %22 : vector<16x64xf32>
    %24 = math.erf %23 : vector<16x64xf32>
    %cst_15 = arith.constant 1.000000e+00 : f32
    %25 = vector.broadcast %cst_15 : f32 to vector<16x64xf32>
    %26 = arith.addf %25, %24 : vector<16x64xf32>
    %27 = arith.mulf %21, %26 : vector<16x64xf32>
    %28 = arith.truncf %27 : vector<16x64xf32> to vector<16x64xbf16>
    %c0_16 = arith.constant 0 : index
    %c0_17 = arith.constant 0 : index
    %29 = vector.load %arg6[%c0_16, %c0_17] : memref<64x32xbf16, #tpu.memory_space<vmem>>, vector<64x32xbf16>
    %cst_18 = arith.constant dense<0.000000e+00> : vector<16x32xf32>
    %30 = tpu.matmul %28, %29, %cst_18 {dimension_numbers = #tpu.dot_dimension_numbers<[1], [0], [0], [1], [0, 0, 1, 1], [], []>} : vector<16x64xbf16>, vector<64x32xbf16>, vector<16x32xf32> -> vector<16x32xf32>
    %c0_19 = arith.constant 0 : index
    %c0_20 = arith.constant 0 : index
    %31 = vector.load %arg7[%c0_19, %c0_20] : memref<1x32xf32, #tpu.memory_space<vmem>>, vector<1x32xf32>
    %32 = vector.broadcast %31 : vector<1x32xf32> to vector<16x32xf32>
    %33 = arith.addf %30, %32 : vector<16x32xf32>
    %34 = arith.mulf %33, %33 : vector<16x32xf32>
    %cst_21 = arith.constant dense<0.000000e+00> : vector<16xf32>
    %35 = vector.multi_reduction <add>, %34, %cst_21 [1] : vector<16x32xf32> to vector<16xf32>
    %36 = vector.shape_cast %35 : vector<16xf32> to vector<16x1xf32>
    %cst_22 = arith.constant 1.000000e-24 : f32
    %37 = vector.broadcast %cst_22 : f32 to vector<16x1xf32>
    %38 = arith.maximumf %36, %37 : vector<16x1xf32>
    %39 = math.rsqrt %38 : vector<16x1xf32>
    %40 = vector.broadcast %39 : vector<16x1xf32> to vector<16x32xf32>
    %41 = arith.mulf %33, %40 : vector<16x32xf32>
    %42 = arith.truncf %41 : vector<16x32xf32> to vector<16x32xbf16>
    %c0_23 = arith.constant 0 : index
    %c0_24 = arith.constant 0 : index
    %43 = vector.load %arg8[%c0_23, %c0_24] : memref<16x32xbf16, #tpu.memory_space<vmem>>, vector<16x32xbf16>
    tpu.vector_store %arg8[%c0_23, %c0_24], %42 {strides = array<i32>} : memref<16x32xbf16, #tpu.memory_space<vmem>>, vector<16x32xbf16>,
    return
  }
  func.func @transform_0(%arg0: i32) -> (i32, i32) {
    %c0_i32 = arith.constant 0 : i32
    %c0_i32_0 = arith.constant 0 : i32
    return %arg0, %c0_i32 : i32, i32
  }
  func.func @transform_1(%arg0: i32) -> (i32, i32) {
    %c0_i32 = arith.constant 0 : i32
    %c0_i32_0 = arith.constant 0 : i32
    %c0_i32_1 = arith.constant 0 : i32
    return %c0_i32, %c0_i32_0 : i32, i32
  }
  func.func @transform_2(%arg0: i32) -> (i32, i32) {
    %c0_i32 = arith.constant 0 : i32
    %c0_i32_0 = arith.constant 0 : i32
    %c0_i32_1 = arith.constant 0 : i32
    return %c0_i32, %c0_i32_0 : i32, i32
  }
  func.func @transform_3(%arg0: i32) -> (i32, i32) {
    %c0_i32 = arith.constant 0 : i32
    %c0_i32_0 = arith.constant 0 : i32
    %c0_i32_1 = arith.constant 0 : i32
    return %c0_i32, %c0_i32_0 : i32, i32
  }
  func.func @transform_4(%arg0: i32) -> (i32, i32) {
    %c0_i32 = arith.constant 0 : i32
    %c0_i32_0 = arith.constant 0 : i32
    %c0_i32_1 = arith.constant 0 : i32
    return %c0_i32, %c0_i32_0 : i32, i32
  }
  func.func @transform_5(%arg0: i32) -> (i32, i32) {
    %c0_i32 = arith.constant 0 : i32
    %c0_i32_0 = arith.constant 0 : i32
    %c0_i32_1 = arith.constant 0 : i32
    return %c0_i32, %c0_i32_0 : i32, i32
  }
  func.func @transform_6(%arg0: i32) -> (i32, i32) {
    %c0_i32 = arith.constant 0 : i32
    %c0_i32_0 = arith.constant 0 : i32
    %c0_i32_1 = arith.constant 0 : i32
    return %c0_i32, %c0_i32_0 : i32, i32
  }
  func.func @transform_7(%arg0: i32) -> (i32, i32) {
    %c0_i32 = arith.constant 0 : i32
    %c0_i32_0 = arith.constant 0 : i32
    return %arg0, %c0_i32 : i32, i32
  }
}

</mosaic_0001>

<llo_original>
// kernel: tpu_custom_call.1
$region0: #{tpu_custom_call.1}
  #allocation0 [shape = 'u32[]', space=smem, size = 0x4, offset = 0x4, fixed_abs, tag = 'smem constant byte address 0x4 - core index']
  #allocation1 [shape = 'u32[144,128]{1,0:T(1,128)}', space=vmem, size = 0x12000, scoped, tag = 'internal scratch']
  %s0 = inlined_call_operand.vmem [shape: bf16[32,32], index: 0, kind: input, shape index: {}]
  %s1 = inlined_call_operand.hbm [shape: bf16[32,64], index: 1, kind: input, shape index: {}]
  %s2 = inlined_call_operand.vmem [shape: f32[1,64], index: 2, kind: input, shape index: {}]
  %s3 = inlined_call_operand.vmem [shape: bf16[64,64], index: 3, kind: input, shape index: {}]
  %s4 = inlined_call_operand.vmem [shape: f32[1,64], index: 4, kind: input, shape index: {}]
  %s5 = inlined_call_operand.vmem [shape: bf16[64,32], index: 5, kind: input, shape index: {}]
  %s6 = inlined_call_operand.vmem [shape: f32[1,32], index: 6, kind: input, shape index: {}]
  %s7 = inlined_call_operand.hbm [shape: bf16[32,32], index: 7, kind: output, shape index: {}]
  %s8 = sld [smem:[#allocation0]]
  $region65: #{tpu_custom_call.1} parent=0
    _
  %s10 = ssub.s32 1, %s8
  %s11 = scalar_select 0, %s10, %s8
  $region1: #{tpu_custom_call.1} parent=0
    #allocation2 [shape = 'u8[8192]{0}', space=vmem, size = 0x2000, scoped, tag = 'input window, operand 1, single buffered']
    #allocation3 [shape = 's32[2]{0}', space=sflag, size = 0x8, scoped, tag = 'scoped memory for tpu_custom_call.1']
    #allocation4 [shape = 's32[2]{0}', space=sflag, size = 0x8, scoped, tag = 'scoped memory for tpu_custom_call.1']
    #allocation5 [shape = 'u8[8192]{0}', space=vmem, size = 0x2000, scoped, tag = 'output window, operand 0']
    %12 = vsyncpa [#allocation3], 0
    %13 = vsyncpa [#allocation4], 0
    %s14 = scalar_lea.sflag [#allocation4], 1
    %15 = vsyncpa %s14, 0
    loop: start=0, step=1, limit=4
    $region2: #{tpu_custom_call.1} parent=1 // loop_pre_header
      _
    $region3: #{tpu_custom_call.1} parent=1 // loop_header
      %s17 = sphi 0, %s21
      %p18 = scmp.ge.s32.totalorder %s17, 4
      %s27 = sphi 0, %s29
      %s30 = sphi 0, %s27
      %s31 = sphi 0, %s30
      %s47 = sphi 0, %s31
      %s51 = sphi 0, %s51
      %s53 = sphi 0, %s51
      %s54 = sphi 0, %s53
      %s68 = sphi 0, %s54
      %s72 = sphi 0, %s72
      %s74 = sphi 0, %s72
      %s75 = sphi 0, %s74
      %s89 = sphi 0, %s75
      %s93 = sphi 0, %s93
      %s95 = sphi 0, %s93
      %s96 = sphi 0, %s95
      %s110 = sphi 0, %s96
      %s114 = sphi 0, %s114
      %s116 = sphi 0, %s114
      %s117 = sphi 0, %s116
      %s131 = sphi 0, %s117
      %s135 = sphi 0, %s135
      %s137 = sphi 0, %s135
      %s138 = sphi 0, %s137
      %s152 = sphi 0, %s138
      %s156 = sphi 0, %s156
      %s158 = sphi 0, %s156
      %s159 = sphi 0, %s158
      %s173 = sphi 0, %s159
      %s179 = sphi 0, %s181
      %s182 = sphi 0, %s179
      %s183 = sphi 0, %s182
      %s199 = sphi 0, %s183
    $region4: #{tpu_custom_call.1} parent=1 // loop_header_branch
      %20 = sbr.rel (%p18) target = $region8
    $region5: #{tpu_custom_call.1} parent=1 // loop_body
      %s22 = ssub.s32 %s17, 1
      %s23 = ssub.s32 %s17, 2
      %s24 = sadd.s32 %s17, 1
      %s25 = ssub.s32 %s17, %s24
      %p26 = scmp.eq.s32.totalorder %s25, 0
      %s28 = sadd.s32 %s27, 1
      %s29 = scalar_select %p26, %s27, %s28
      %p32 = pneg %p26
      %p33 = scmp.eq.s32.totalorder %s17, 1
      %p34 = por %p32, %p33
      %p35 = scmp.ne.s32.totalorder %s27, %s30
      %p36 = scmp.eq.s32.totalorder %s17, 0
      %p37 = por %p35, %p36
      %p38 = scmp.ne.s32.totalorder %s27, %s30
      %p39 = scmp.eq.s32.totalorder %s22, 1
      %p40 = por %p38, %p39
      %p41 = scmp.ne.s32.totalorder %s30, %s31
      %p42 = scmp.eq.s32.totalorder %s22, 0
      %p43 = por %p41, %p42
      %p44 = scmp.ne.s32.totalorder %s30, %s31
      %p45 = scmp.eq.s32.totalorder %s23, 1
      %p46 = por %p44, %p45
      %p48 = scmp.ne.s32.totalorder %s31, %s47
      %p49 = scmp.eq.s32.totalorder %s23, 0
      %p50 = por %p48, %p49
      %s52 = sadd.s32 %s51, 1
      %p55 = scmp.eq.s32.totalorder %s17, 1
      %p56 = scmp.ne.s32.totalorder %s51, %s53
      %p57 = scmp.eq.s32.totalorder %s17, 0
      %p58 = por %p56, %p57
      %p59 = scmp.ne.s32.totalorder %s51, %s53
      %p60 = scmp.eq.s32.totalorder %s22, 1
      %p61 = por %p59, %p60
      %p62 = scmp.ne.s32.totalorder %s53, %s54
      %p63 = scmp.eq.s32.totalorder %s22, 0
      %p64 = por %p62, %p63
      %p65 = scmp.ne.s32.totalorder %s53, %s54
      %p66 = scmp.eq.s32.totalorder %s23, 1
      %p67 = por %p65, %p66
      %p69 = scmp.ne.s32.totalorder %s54, %s68
      %p70 = scmp.eq.s32.totalorder %s23, 0
      %p71 = por %p69, %p70
      %s73 = sadd.s32 %s72, 1
      %p76 = scmp.eq.s32.totalorder %s17, 1
      %p77 = scmp.ne.s32.totalorder %s72, %s74
      %p78 = scmp.eq.s32.totalorder %s17, 0
      %p79 = por %p77, %p78
      %p80 = scmp.ne.s32.totalorder %s72, %s74
      %p81 = scmp.eq.s32.totalorder %s22, 1
      %p82 = por %p80, %p81
      %p83 = scmp.ne.s32.totalorder %s74, %s75
      %p84 = scmp.eq.s32.totalorder %s22, 0
      %p85 = por %p83, %p84
      %p86 = scmp.ne.s32.totalorder %s74, %s75
      %p87 = scmp.eq.s32.totalorder %s23, 1
      %p88 = por %p86, %p87
      %p90 = scmp.ne.s32.totalorder %s75, %s89
      %p91 = scmp.eq.s32.totalorder %s23, 0
      %p92 = por %p90, %p91
      %s94 = sadd.s32 %s93, 1
      %p97 = scmp.eq.s32.totalorder %s17, 1
      %p98 = scmp.ne.s32.totalorder %s93, %s95
      %p99 = scmp.eq.s32.totalorder %s17, 0
      %p100 = por %p98, %p99
      %p101 = scmp.ne.s32.totalorder %s93, %s95
      %p102 = scmp.eq.s32.totalorder %s22, 1
      %p103 = por %p101, %p102
      %p104 = scmp.ne.s32.totalorder %s95, %s96
      %p105 = scmp.eq.s32.totalorder %s22, 0
      %p106 = por %p104, %p105
      %p107 = scmp.ne.s32.totalorder %s95, %s96
      %p108 = scmp.eq.s32.totalorder %s23, 1
      %p109 = por %p107, %p108
      %p111 = scmp.ne.s32.totalorder %s96, %s110
      %p112 = scmp.eq.s32.totalorder %s23, 0
      %p113 = por %p111, %p112
      %s115 = sadd.s32 %s114, 1
      %p118 = scmp.eq.s32.totalorder %s17, 1
      %p119 = scmp.ne.s32.totalorder %s114, %s116
      %p120 = scmp.eq.s32.totalorder %s17, 0
      %p121 = por %p119, %p120
      %p122 = scmp.ne.s32.totalorder %s114, %s116
      %p123 = scmp.eq.s32.totalorder %s22, 1
      %p124 = por %p122, %p123
      %p125 = scmp.ne.s32.totalorder %s116, %s117
      %p126 = scmp.eq.s32.totalorder %s22, 0
      %p127 = por %p125, %p126
      %p128 = scmp.ne.s32.totalorder %s116, %s117
      %p129 = scmp.eq.s32.totalorder %s23, 1
      %p130 = por %p128, %p129
      %p132 = scmp.ne.s32.totalorder %s117, %s131
      %p133 = scmp.eq.s32.totalorder %s23, 0
      %p134 = por %p132, %p133
      %s136 = sadd.s32 %s135, 1
      %p139 = scmp.eq.s32.totalorder %s17, 1
      %p140 = scmp.ne.s32.totalorder %s135, %s137
      %p141 = scmp.eq.s32.totalorder %s17, 0
      %p142 = por %p140, %p141
      %p143 = scmp.ne.s32.totalorder %s135, %s137
      %p144 = scmp.eq.s32.totalorder %s22, 1
      %p145 = por %p143, %p144
      %p146 = scmp.ne.s32.totalorder %s137, %s138
      %p147 = scmp.eq.s32.totalorder %s22, 0
      %p148 = por %p146, %p147
      %p149 = scmp.ne.s32.totalorder %s137, %s138
      %p150 = scmp.eq.s32.totalorder %s23, 1
      %p151 = por %p149, %p150
      %p153 = scmp.ne.s32.totalorder %s138, %s152
      %p154 = scmp.eq.s32.totalorder %s23, 0
      %p155 = por %p153, %p154
      %s157 = sadd.s32 %s156, 1
      %p160 = scmp.eq.s32.totalorder %s17, 1
      %p161 = scmp.ne.s32.totalorder %s156, %s158
      %p162 = scmp.eq.s32.totalorder %s17, 0
      %p163 = por %p161, %p162
      %p164 = scmp.ne.s32.totalorder %s156, %s158
      %p165 = scmp.eq.s32.totalorder %s22, 1
      %p166 = por %p164, %p165
      %p167 = scmp.ne.s32.totalorder %s158, %s159
      %p168 = scmp.eq.s32.totalorder %s22, 0
      %p169 = por %p167, %p168
      %p170 = scmp.ne.s32.totalorder %s158, %s159
      %p171 = scmp.eq.s32.totalorder %s23, 1
      %p172 = por %p170, %p171
      %p174 = scmp.ne.s32.totalorder %s159, %s173
      %p175 = scmp.eq.s32.totalorder %s23, 0
      %p176 = por %p174, %p175
      %s177 = ssub.s32 %s17, %s24
      %p178 = scmp.eq.s32.totalorder %s177, 0
      %s180 = sadd.s32 %s179, 1
      %s181 = scalar_select %p178, %s179, %s180
      %p184 = pneg %p178
      %p185 = scmp.eq.s32.totalorder %s17, 1
      %p186 = por %p184, %p185
      %p187 = scmp.ne.s32.totalorder %s179, %s182
      %p188 = scmp.eq.s32.totalorder %s17, 0
      %p189 = por %p187, %p188
      %p190 = scmp.ne.s32.totalorder %s179, %s182
      %p191 = scmp.eq.s32.totalorder %s22, 1
      %p192 = por %p190, %p191
      %p193 = scmp.ne.s32.totalorder %s182, %s183
      %p194 = scmp.eq.s32.totalorder %s22, 0
      %p195 = por %p193, %p194
      %p196 = scmp.ne.s32.totalorder %s182, %s183
      %p197 = scmp.eq.s32.totalorder %s23, 1
      %p198 = por %p196, %p197
      %p200 = scmp.ne.s32.totalorder %s183, %s199
      %p201 = scmp.eq.s32.totalorder %s23, 0
      %p202 = por %p200, %p201
      %p203 = scmp.le.s32.totalorder 1, %s17
      %p204 = scmp.lt.s32.totalorder %s17, 3
      %p205 = pnand %p203, %p204
      %p206 = pneg %p205
      // Predicated region
      $region9: #{tpu_custom_call.1} parent=5 // pred_check
        _
      $region10: #{tpu_custom_call.1} parent=5 // pred_check_branch
        %208 = sbr.rel (%p205) target = $region12
      $region11: #{tpu_custom_call.1} parent=5 // pred_region
        %s209 = ssub.s32 %s17, 1
        // Predicated region
        $region13: #{tpu_custom_call.1} parent=11 // pred_check
          %p210 = pneg %p64
        $region14: #{tpu_custom_call.1} parent=11 // pred_check_branch
          %212 = sbr.rel (%p210) target = $region16
        $region15: #{tpu_custom_call.1} parent=11 // pred_region
          %s214 = ssub.s32 256, 256
          %215 = vsyncadd [#allocation3], %s214
          %s216 = sshll.u32 [#allocation2], 4
          %s217 = int_to_ptr.vmem [resolvable:$true] %s216
          %222 = dma.hbm_to_vmem [thread:$0]  %s1, 256, %s217, [#allocation3], 64, 64, 4
        $region16: #{tpu_custom_call.1} parent=11 // pred_fallthru
          _
        // Predicated region
        $region17: #{tpu_custom_call.1} parent=11 // pred_check
          %p223 = pneg %p85
        $region18: #{tpu_custom_call.1} parent=11 // pred_check_branch
          %225 = sbr.rel (%p223) target = $region20
        $region19: #{tpu_custom_call.1} parent=11 // pred_region
          _
        $region20: #{tpu_custom_call.1} parent=11 // pred_fallthru
          _
        // Predicated region
        $region21: #{tpu_custom_call.1} parent=11 // pred_check
          %p226 = pneg %p106
        $region22: #{tpu_custom_call.1} parent=11 // pred_check_branch
          %228 = sbr.rel (%p226) target = $region24
        $region23: #{tpu_custom_call.1} parent=11 // pred_region
          _
        $region24: #{tpu_custom_call.1} parent=11 // pred_fallthru
          _
        // Predicated region
        $region25: #{tpu_custom_call.1} parent=11 // pred_check
          %p229 = pneg %p127
        $region26: #{tpu_custom_call.1} parent=11 // pred_check_branch
          %231 = sbr.rel (%p229) target = $region28
        $region27: #{tpu_custom_call.1} parent=11 // pred_region
          _
        $region28: #{tpu_custom_call.1} parent=11 // pred_fallthru
          _
        // Predicated region
        $region29: #{tpu_custom_call.1} parent=11 // pred_check
          %p232 = pneg %p148
        $region30: #{tpu_custom_call.1} parent=11 // pred_check_branch
          %234 = sbr.rel (%p232) target = $region32
        $region31: #{tpu_custom_call.1} parent=11 // pred_region
          _
        $region32: #{tpu_custom_call.1} parent=11 // pred_fallthru
          _
        // Predicated region
        $region33: #{tpu_custom_call.1} parent=11 // pred_check
          %p235 = pneg %p169
        $region34: #{tpu_custom_call.1} parent=11 // pred_check_branch
          %237 = sbr.rel (%p235) target = $region36
        $region35: #{tpu_custom_call.1} parent=11 // pred_region
          _
        $region36: #{tpu_custom_call.1} parent=11 // pred_fallthru
          _
      $region12: #{tpu_custom_call.1} parent=5 // pred_fallthru
        _
      %p238 = scmp.lt.s32.totalorder %s17, 2
      // Predicated region
      $region37: #{tpu_custom_call.1} parent=5 // pred_check
        %p239 = pneg %p238
      $region38: #{tpu_custom_call.1} parent=5 // pred_check_branch
        %241 = sbr.rel (%p239) target = $region40
      $region39: #{tpu_custom_call.1} parent=5 // pred_region
        // Predicated region
        $region41: #{tpu_custom_call.1} parent=39 // pred_check
          %p242 = pneg %p37
        $region42: #{tpu_custom_call.1} parent=39 // pred_check_branch
          %244 = sbr.rel (%p242) target = $region44
        $region43: #{tpu_custom_call.1} parent=39 // pred_region
          %s245 = smul.u32 2, %s17
          %p246 = scmp.lt.s32.totalorder %s245, 3
          %s247 = scalar_select %p246, %s245, 3
          %s248 = smul.addr %s247, 4
          %s249 = scalar_lea.vmem %s0, %s248
          %s250 = smul.u32 2, %s17
        $region44: #{tpu_custom_call.1} parent=39 // pred_fallthru
          _
      $region40: #{tpu_custom_call.1} parent=5 // pred_fallthru
        _
      %p251 = scmp.le.s32.totalorder 1, %s17
      %p252 = scmp.lt.s32.totalorder %s17, 3
      %p253 = pnand %p251, %p252
      %p254 = pneg %p253
      // Predicated region
      $region45: #{tpu_custom_call.1} parent=5 // pred_check
        _
      $region46: #{tpu_custom_call.1} parent=5 // pred_check_branch
        %256 = sbr.rel (%p253) target = $region48
      $region47: #{tpu_custom_call.1} parent=5 // pred_region
        %s257 = ssub.s32 %s17, 1
        // Predicated region
        $region49: #{tpu_custom_call.1} parent=47 // pred_check
          %p258 = pneg %p64
        $region50: #{tpu_custom_call.1} parent=47 // pred_check_branch
          %260 = sbr.rel (%p258) target = $region52
        $region51: #{tpu_custom_call.1} parent=47 // pred_region
          %261 = dma.done [#allocation3], 256
        $region52: #{tpu_custom_call.1} parent=47 // pred_fallthru
          _
        %s262 = smul.u32 2, %s22
        %p263 = scmp.lt.s32.totalorder %s262, 3
        %s264 = scalar_select %p263, %s262, 3
        %s265 = smul.addr %s264, 4
        %s266 = scalar_lea.vmem %s0, %s265
        %p267 = pneg %p43
        %p268 = pneg %p40
        %p269 = pneg %p64
        %p270 = pneg %p61
        %p271 = pneg %p85
        %p272 = pneg %p82
        %p273 = pneg %p106
        %p274 = pneg %p103
        %p275 = pneg %p127
        %p276 = pneg %p124
        %p277 = pneg %p148
        %p278 = pneg %p145
        %p279 = pneg %p169
        %p280 = pneg %p166
        %p281 = pneg %p195
        %p282 = pneg %p192
        %s283 = sand.u32 %s182, 1
        %s284 = scalar_lea.sflag [#allocation4], %s283
        %s285 = sand.u32 %s182, 1
        %s286 = smul.addr %s285, 8
        %s287 = scalar_lea.vmem [#allocation5], %s286
        %s288 = smul.u32 2, %s22
        %p289 = scmp.lt.s32.totalorder %s288, 3
        %s290 = scalar_select %p289, %s288, 3
        %s291 = smul.addr %s290, 4
        %s292 = scalar_lea.vmem %s0, %s291
        %s293 = smul.u32 2, %s22
        %s294 = smul.u32 2, %s22
        %v296 = vld [vmem:[%s292] sm:$0xf]
        %v297 = vld [vmem:[%s292 + $0x4] sm:$0xf]
        %v298 = vld [vmem:[#allocation2] sm:$0xf]
        %v299 = vld [vmem:[#allocation2 + $0x4] sm:$0xf]
        %v300 = vld [vmem:[#allocation2 + $0x8] sm:$0xf]
        %v301 = vld [vmem:[#allocation2 + $0xc] sm:$0xf]
        %v302 = vld [vmem:[%s2] sm:$0x1]
        %v304 = vlaneseq
        %v305 = vshrl.u32 %v304, 7
        %v306 = vsub.s32 0, %v305
        %v307 = vrot.slane %v302, %v306
        %v311 = vunpack.c.l.b16 %v296
        %v312 = vunpack.c.l.b16 %v297
        %v313 = vpack.c.b16 %v312, %v311
        %v318 = vunpack.c.l.b16 %v298
        %v319 = vunpack.c.l.b16 %v299
        %v320 = vunpack.c.l.b16 %v300
        %v321 = vunpack.c.l.b16 %v301
        %v322 = vpack.c.b16 %v319, %v318
        %v323 = vpack.c.b16 %v321, %v320
        %vm326 = vcmask 261120
        %v328 = vsel %vm326, %v313, 0
        %330 = vmatprep.subr.bf16.mxu0 0
        %331 = vmatpush1.bf16.msra.mxu0 0
        %332 = vmatprep.subr.bf16.mxu0 0
        %333 = vmatpush1.bf16.msra.mxu0 0
        %334 = vmatprep.subr.bf16.mxu0 0
        %335 = vmatpush1.bf16.msra.mxu0 0
        %336 = vmatprep.subr.bf16.mxu0 0
        %337 = vmatpush1.bf16.msra.mxu0 0
        %338 = vmatprep.subr.bf16.mxu0 0
        %339 = vmatpush1.bf16.msra.mxu0 0
        %340 = vmatprep.subr.bf16.mxu0 0
        %341 = vmatpush1.bf16.msra.mxu0 0
        %342 = vmatprep.subr.bf16.mxu0 0
        %343 = vmatpush1.bf16.msra.mxu0 %v323
        %344 = vmatprep.subr.bf16.mxu0 0
        %345 = vmatpush1.bf16.msra.mxu0 %v322
        %346 = vmatprep.subr.bf16.mxu0 0
        %347 = vmatpush2.bf16.msra.mxu0 0
        %348 = vmatprep.subr.bf16.mxu0 0
        %349 = vmatpush2.bf16.msra.mxu0 0
        %350 = vmatprep.subr.bf16.mxu0 0
        %351 = vmatpush2.bf16.msra.mxu0 0
        %352 = vmatprep.subr.bf16.mxu0 0
        %353 = vmatpush2.bf16.msra.mxu0 0
        %354 = vmatprep.subr.bf16.mxu0 0
        %355 = vmatpush2.bf16.msra.mxu0 0
        %356 = vmatprep.subr.bf16.mxu0 0
        %357 = vmatpush2.bf16.msra.mxu0 0
        %358 = vmatprep.subr.bf16.mxu0 0
        %359 = vmatpush2.bf16.msra.mxu0 0
        %360 = vmatprep.subr.bf16.mxu0 0
        %361 = vmatpush2.bf16.msra.mxu0 0
        %362 = vmatprep.mubr.bf16.mxu0 0
        %363 = vmatmul.mubr.bf16.gmra.mxu0 %v328
        %v364 = vpop.f32.mrf.mxu0
        %v365 = vadd.f32 %v307, %v364
        %v366 = vpop.f32.mrf.mxu0
        %v367 = vpop.f32.mrf.mxu0
        %v368 = vadd.f32 %v307, %v367
        %v369 = vpop.f32.mrf.mxu0
        %370 = vdwg.mxu0
        %v371 = vmul.f32 %v365, 0.5
        %v372 = vmul.f32 %v368, 0.5
        %v373 = vmul.f32 %v365, 0.70710677
        %v374 = vmul.f32 %v368, 0.70710677
        %v375 = verf.f32.pop %v373
        %v376 = verf.f32.pop %v374
        %v377 = vadd.f32 %v375, 1.0
        %v378 = vadd.f32 %v376, 1.0
        %v379 = vmul.f32 %v371, %v377
        %v380 = vmul.f32 %v372, %v378
        %v381 = vpack.c.bf16 %v380, %v379
        %v382 = vld [vmem:[%s3] sm:$0xf]
        %v383 = vld [vmem:[%s3 + $0x4] sm:$0xf]
        %v384 = vld [vmem:[%s3 + $0x8] sm:$0xf]
        %v385 = vld [vmem:[%s3 + $0xc] sm:$0xf]
        %v386 = vld [vmem:[%s3 + $0x10] sm:$0xf]
        %v387 = vld [vmem:[%s3 + $0x14] sm:$0xf]
        %v388 = vld [vmem:[%s3 + $0x18] sm:$0xf]
        %v389 = vld [vmem:[%s3 + $0x1c] sm:$0xf]
        %v390 = vld [vmem:[%s4] sm:$0x1]
        %v392 = vlaneseq
        %v393 = vshrl.u32 %v392, 7
        %v394 = vsub.s32 0, %v393
        %v395 = vrot.slane %v390, %v394
        %v405 = vunpack.c.l.b16 %v382
        %v406 = vunpack.c.l.b16 %v383
        %v407 = vunpack.c.l.b16 %v384
        %v408 = vunpack.c.l.b16 %v385
        %v409 = vunpack.c.l.b16 %v386
        %v410 = vunpack.c.l.b16 %v387
        %v411 = vunpack.c.l.b16 %v388
        %v412 = vunpack.c.l.b16 %v389
        %v413 = vpack.c.b16 %v406, %v405
        %v414 = vpack.c.b16 %v408, %v407
        %v415 = vpack.c.b16 %v410, %v409
        %v416 = vpack.c.b16 %v412, %v411
        %vm421 = vcmask 523264
        %v423 = vsel %vm421, %v381, 0
        %425 = vmatprep.subr.bf16.mxu0 0
        %426 = vmatpush1.bf16.msra.mxu0 0
        %427 = vmatprep.subr.bf16.mxu0 0
        %428 = vmatpush1.bf16.msra.mxu0 0
        %429 = vmatprep.subr.bf16.mxu0 0
        %430 = vmatpush1.bf16.msra.mxu0 0
        %431 = vmatprep.subr.bf16.mxu0 0
        %432 = vmatpush1.bf16.msra.mxu0 0
        %433 = vmatprep.subr.bf16.mxu0 0
        %434 = vmatpush1.bf16.msra.mxu0 %v416
        %435 = vmatprep.subr.bf16.mxu0 0
        %436 = vmatpush1.bf16.msra.mxu0 %v415
        %437 = vmatprep.subr.bf16.mxu0 0
        %438 = vmatpush1.bf16.msra.mxu0 %v414
        %439 = vmatprep.subr.bf16.mxu0 0
        %440 = vmatpush1.bf16.msra.mxu0 %v413
        %441 = vmatprep.subr.bf16.mxu0 0
        %442 = vmatpush2.bf16.msra.mxu0 0
        %443 = vmatprep.subr.bf16.mxu0 0
        %444 = vmatpush2.bf16.msra.mxu0 0
        %445 = vmatprep.subr.bf16.mxu0 0
        %446 = vmatpush2.bf16.msra.mxu0 0
        %447 = vmatprep.subr.bf16.mxu0 0
        %448 = vmatpush2.bf16.msra.mxu0 0
        %449 = vmatprep.subr.bf16.mxu0 0
        %450 = vmatpush2.bf16.msra.mxu0 0
        %451 = vmatprep.subr.bf16.mxu0 0
        %452 = vmatpush2.bf16.msra.mxu0 0
        %453 = vmatprep.subr.bf16.mxu0 0
        %454 = vmatpush2.bf16.msra.mxu0 0
        %455 = vmatprep.subr.bf16.mxu0 0
        %456 = vmatpush2.bf16.msra.mxu0 0
        %457 = vmatprep.mubr.bf16.mxu0 0
        %458 = vmatmul.mubr.bf16.gmra.mxu0 %v423
        %v459 = vpop.f32.mrf.mxu0
        %v460 = vadd.f32 %v395, %v459
        %v461 = vpop.f32.mrf.mxu0
        %v462 = vpop.f32.mrf.mxu0
        %v463 = vadd.f32 %v395, %v462
        %v464 = vpop.f32.mrf.mxu0
        %465 = vdwg.mxu0
        %v466 = vmul.f32 %v460, 0.5
        %v467 = vmul.f32 %v463, 0.5
        %v468 = vmul.f32 %v460, 0.70710677
        %v469 = vmul.f32 %v463, 0.70710677
        %v470 = verf.f32.pop %v468
        %v471 = verf.f32.pop %v469
        %v472 = vadd.f32 %v470, 1.0
        %v473 = vadd.f32 %v471, 1.0
        %v474 = vmul.f32 %v466, %v472
        %v475 = vmul.f32 %v467, %v473
        %v476 = vpack.c.bf16 %v475, %v474
        %v477 = vld [vmem:[%s5] sm:$0xf]
        %v478 = vld [vmem:[%s5 + $0x4] sm:$0xf]
        %v479 = vld [vmem:[%s5 + $0x8] sm:$0xf]
        %v480 = vld [vmem:[%s5 + $0xc] sm:$0xf]
        %v481 = vld [vmem:[%s5 + $0x10] sm:$0xf]
        %v482 = vld [vmem:[%s5 + $0x14] sm:$0xf]
        %v483 = vld [vmem:[%s5 + $0x18] sm:$0xf]
        %v484 = vld [vmem:[%s5 + $0x1c] sm:$0xf]
        %v485 = vld [vmem:[%s6] sm:$0x1]
        %v487 = vlaneseq
        %v488 = vshrl.u32 %v487, 7
        %v489 = vsub.s32 0, %v488
        %v490 = vrot.slane %v485, %v489
        %v500 = vunpack.c.l.b16 %v477
        %v501 = vunpack.c.l.b16 %v478
        %v502 = vunpack.c.l.b16 %v479
        %v503 = vunpack.c.l.b16 %v480
        %v504 = vunpack.c.l.b16 %v481
        %v505 = vunpack.c.l.b16 %v482
        %v506 = vunpack.c.l.b16 %v483
        %v507 = vunpack.c.l.b16 %v484
        %v508 = vpack.c.b16 %v501, %v500
        %v509 = vpack.c.b16 %v503, %v502
        %v510 = vpack.c.b16 %v505, %v504
        %v511 = vpack.c.b16 %v507, %v506
        %v517 = vsel %vm421, %v476, 0
        %519 = vmatprep.subr.bf16.mxu0 0
        %520 = vmatpush1.bf16.msra.mxu0 0
        %521 = vmatprep.subr.bf16.mxu0 0
        %522 = vmatpush1.bf16.msra.mxu0 0
        %523 = vmatprep.subr.bf16.mxu0 0
        %524 = vmatpush1.bf16.msra.mxu0 0
        %525 = vmatprep.subr.bf16.mxu0 0
        %526 = vmatpush1.bf16.msra.mxu0 0
        %527 = vmatprep.subr.bf16.mxu0 0
        %528 = vmatpush1.bf16.msra.mxu0 %v511
        %529 = vmatprep.subr.bf16.mxu0 0
        %530 = vmatpush1.bf16.msra.mxu0 %v510
        %531 = vmatprep.subr.bf16.mxu0 0
        %532 = vmatpush1.bf16.msra.mxu0 %v509
        %533 = vmatprep.subr.bf16.mxu0 0
        %534 = vmatpush1.bf16.msra.mxu0 %v508
        %535 = vmatprep.subr.bf16.mxu0 0
        %536 = vmatpush2.bf16.msra.mxu0 0
        %537 = vmatprep.subr.bf16.mxu0 0
        %538 = vmatpush2.bf16.msra.mxu0 0
        %539 = vmatprep.subr.bf16.mxu0 0
        %540 = vmatpush2.bf16.msra.mxu0 0
        %541 = vmatprep.subr.bf16.mxu0 0
        %542 = vmatpush2.bf16.msra.mxu0 0
        %543 = vmatprep.subr.bf16.mxu0 0
        %544 = vmatpush2.bf16.msra.mxu0 0
        %545 = vmatprep.subr.bf16.mxu0 0
        %546 = vmatpush2.bf16.msra.mxu0 0
        %547 = vmatprep.subr.bf16.mxu0 0
        %548 = vmatpush2.bf16.msra.mxu0 0
        %549 = vmatprep.subr.bf16.mxu0 0
        %550 = vmatpush2.bf16.msra.mxu0 0
        %551 = vmatprep.mubr.bf16.mxu0 0
        %552 = vmatmul.mubr.bf16.gmra.mxu0 %v517
        %v553 = vpop.f32.mrf.mxu0
        %v554 = vadd.f32 %v490, %v553
        %v555 = vpop.f32.mrf.mxu0
        %v556 = vpop.f32.mrf.mxu0
        %v557 = vadd.f32 %v490, %v556
        %v558 = vpop.f32.mrf.mxu0
        %559 = vdwg.mxu0
        %v560 = vmul.f32 %v554, %v554
        %v561 = vmul.f32 %v557, %v557
        %v562 = vsel %vm326, %v560, 0.0
        %563 = vadd.xlane.f32.xlu0 %v562
        %v564 = vpop.xlane.xlu0 %563
        %v565 = vsel %vm326, %v561, 0.0
        %566 = vadd.xlane.f32.xlu0 %v565
        %v567 = vpop.xlane.xlu0 %566
        %v568 = vmax.f32 %v564, 1e-24
        %v569 = vmax.f32 %v567, 1e-24
        %v570 = vrsqrt.pop %v568
        %v571 = vrsqrt.pop %v569
        %v572 = vmul.f32 %v554, %v570
        %v573 = vmul.f32 %v557, %v571
        %v574 = vpack.c.bf16 %v573, %v572
        %v576 = vunpack.c.l.b16 %v574
        %v577 = vunpack.c.h.b16 %v574
        %v578 = vpack.c.b16 %v576, %v576
        %v579 = vpack.c.b16 %v577, %v577
        %vm582 = vcmask 257024
        %583 = vst.msk [vmem:[%s287] sm:$0xf] %vm582, %v578
        %584 = vst.msk [vmem:[%s287 + $0x4] sm:$0xf] %vm582, %v579
        %s585 = sand.u32 %s182, 1
        %s586 = scalar_lea.sflag [#allocation4], %s585
        %s587 = sand.u32 %s182, 1
        %s588 = smul.addr %s587, 8
        %s589 = scalar_lea.vmem [#allocation5], %s588
        // Predicated region
        $region53: #{tpu_custom_call.1} parent=47 // pred_check
          %p590 = pneg %p192
        $region54: #{tpu_custom_call.1} parent=47 // pred_check_branch
          %592 = sbr.rel (%p590) target = $region56
        $region55: #{tpu_custom_call.1} parent=47 // pred_region
          %s593 = smul.u32 2, %s22
          %s595 = ssub.s32 128, 128
          %596 = vsyncadd %s586, %s595
          %s597 = smul.addr %s593, 64
          %s598 = scalar_lea.hbm %s7, %s597
          %s599 = sshll.u32 %s589, 4
          %s600 = int_to_ptr.vmem [resolvable:$true] %s599
          %605 = dma.vmem_to_hbm [thread:$0]  %s600, 128, %s598, %s586, 64, 64, 4
        $region56: #{tpu_custom_call.1} parent=47 // pred_fallthru
          _
      $region48: #{tpu_custom_call.1} parent=5 // pred_fallthru
        _
      %p606 = scmp.le.s32.totalorder 2, %s17
      // Predicated region
      $region57: #{tpu_custom_call.1} parent=5 // pred_check
        %p607 = pneg %p606
      $region58: #{tpu_custom_call.1} parent=5 // pred_check_branch
        %609 = sbr.rel (%p607) target = $region60
      $region59: #{tpu_custom_call.1} parent=5 // pred_region
        %s610 = ssub.s32 %s17, 2
        // Predicated region
        $region61: #{tpu_custom_call.1} parent=59 // pred_check
          %p611 = pneg %p198
        $region62: #{tpu_custom_call.1} parent=59 // pred_check_branch
          %613 = sbr.rel (%p611) target = $region64
        $region63: #{tpu_custom_call.1} parent=59 // pred_region
          %s614 = sand.u32 %s183, 1
          %s615 = scalar_lea.sflag [#allocation4], %s614
          %s616 = sand.u32 %s183, 1
          %s617 = smul.addr %s616, 8
          %s618 = scalar_lea.vmem [#allocation5], %s617
          %619 = dma.done %s615, 128
        $region64: #{tpu_custom_call.1} parent=59 // pred_fallthru
          _
      $region60: #{tpu_custom_call.1} parent=5 // pred_fallthru
        _
    $region6: #{tpu_custom_call.1} parent=1 // loop_footer
      %s21 = sadd.s32 1, %s17
    $region7: #{tpu_custom_call.1} parent=1 // loop_footer_branch
      %16 = sbr.rel target = $region3
    $region8: #{tpu_custom_call.1} parent=1 // loop_exit
      _
    %620 = vsyncpa [#allocation3], 1
    %s621 = scalar_lea.sflag [#allocation3], 1
    %622 = vsyncpa %s621, 1
    %623 = vsyncpa [#allocation4], 1
    %s624 = scalar_lea.sflag [#allocation4], 1
    %625 = vsyncpa %s624, 1

</llo_original>
